<compile_context>
chip_gen: v6e
topology: v6e:2x2x1
jax: 0.10.0
libtpu: 0.0.40
codegen_flags: <defaults>
</compile_context>

<pallas_src>
import functools

import jax
import jax.numpy as jnp
from jax.experimental import pallas as pl
from jax.experimental.pallas import tpu as pltpu

LANE = 128


def _round_up(x, m):
    return ((x + m - 1) // m) * m


def _choose_tm(M, max_tm=512):
    """Largest power-of-two row tile <= max_tm that still gives >= 2 grid points."""
    tm = max_tm
    while tm > 8 and tm >= M:
        tm //= 2
    return max(tm, 8)


def _ff_fused_kernel(*refs, n_layers):
    """refs = (x_ref, w0_ref, b0_ref, w1_ref, b1_ref, ..., o_ref).

    Applies y = tanh(y @ W_l + b_l) for every layer on a resident row tile.
    Matmuls hit the MXU (f32 accumulate), tanh goes to the EUP, bias add on the VPU.
    """
    x_ref = refs[0]
    o_ref = refs[-1]
    y = x_ref[...].astype(jnp.float32)
    for l in range(n_layers):
        w_ref = refs[1 + 2 * l]
        b_ref = refs[2 + 2 * l]
        y = jnp.dot(y, w_ref[...], preferred_element_type=jnp.float32)
        y = y + b_ref[...]          # (1, Np) broadcasts over rows
        y = jnp.tanh(y)
    o_ref[...] = y.astype(o_ref.dtype)


def init_ff_params(key, n_features, hidden_size):
    """Deterministic parameter init matching nn.Linear shapes:
    weight (out, in) -> stored here transposed as (in, out); bias (out,)."""
    params = []
    fan_in = n_features
    for h in hidden_size:
        key, kw, kb = jax.random.split(key, 3)
        bound = 1.0 / jnp.sqrt(jnp.float32(fan_in))
        w = jax.random.uniform(kw, (fan_in, h), jnp.float32, -bound, bound)
        b = jax.random.uniform(kb, (h,), jnp.float32, -bound, bound)
        params.append((w, b))
        fan_in = h
    return params


def pad_ff_params(params):
    """Zero-pad each layer's (K, N) weight / (N,) bias so K and N are lane (128) multiples.

    Zero padding keeps the math exact: padded output columns are tanh(0 + 0) = 0, and the
    next layer's zero-padded weight rows multiply those zeros away.
    """
    padded = []
    for w, b in params:
        K, N = w.shape
        Kp, Np = _round_up(K, LANE), _round_up(N, LANE)
        wp = jnp.zeros((Kp, Np), jnp.float32).at[:K, :N].set(w.astype(jnp.float32))
        bp = jnp.zeros((1, Np), jnp.float32).at[0, :N].set(b.astype(jnp.float32))
        padded.append((wp, bp))
    return padded


@functools.partial(jax.jit, static_argnames=("max_tm",))
def ff_forward(features, params, *, max_tm=512):
    """FF.forward: successive Linear + tanh layers, fused into one Pallas kernel.

    features: (batch, n_samples, n_features) or (batch, n_features)
    params  : list of (w (in,out), b (out,)) per layer
    returns : (..., hidden_size[-1])
    """
    orig_shape = features.shape
    n_features = orig_shape[-1]
    out_dim = params[-1][1].shape[0]          # true last hidden size

    x = features.reshape(-1, n_features).astype(jnp.float32)   # (M, K)
    M, K = x.shape

    padded_params = pad_ff_params(params)
    Kp = padded_params[0][0].shape[0]
    Np_last = padded_params[-1][0].shape[1]

    tm = _choose_tm(M, max_tm)
    Mp = _round_up(M, tm)

    # Pad rows and the input feature dim ONCE (single extra copy for the whole stack).
    x_pad = jnp.zeros((Mp, Kp), jnp.float32).at[:M, :K].set(x)

    n_layers = len(params)
    in_specs = [pl.BlockSpec((tm, Kp), lambda i: (i, 0))]       # row tile of activations
    flat_wb = []
    for wp, bp in padded_params:
        kp, np_ = wp.shape
        # Weights/bias: constant index_map -> resident in VMEM across the whole row grid.
        in_specs.append(pl.BlockSpec((kp, np_), lambda i: (0, 0)))
        in_specs.append(pl.BlockSpec((1, np_), lambda i: (0, 0)))
        flat_wb.extend([wp, bp])

    out = pl.pallas_call(
        functools.partial(_ff_fused_kernel, n_layers=n_layers),
        out_shape=jax.ShapeDtypeStruct((Mp, Np_last), jnp.float32),
        grid=(Mp // tm,),
        in_specs=in_specs,
        out_specs=pl.BlockSpec((tm, Np_last), lambda i: (i, 0)),
        compiler_params=pltpu.CompilerParams(
            dimension_semantics=("parallel",),   # row tiles shard across TensorCores
        ),
    )(x_pad, *flat_wb)

    out = out[:M, :out_dim]
    return out.reshape(*orig_shape[:-1], out_dim)


def ff_reference(features, params):
    x = features
    for w, b in params:
        x = jnp.tanh(x @ w + b)
    return x


if __name__ == "__main__":
    key = jax.random.PRNGKey(0)
    k_in, k_par = jax.random.split(key)

    batch, n_samples, n_features = 2, 8, 32
    hidden_size = [64, 16]

    features = jax.random.normal(k_in, (batch, n_samples, n_features), jnp.float32)
    params = init_ff_params(k_par, n_features, hidden_size)

    out = ff_forward(features, params)
    out = jax.block_until_ready(out)

    ref = ff_reference(features, params)
    assert out.shape == (batch, n_samples, hidden_size[-1]), out.shape
    assert jnp.allclose(out, ref, atol=1e-5, rtol=1e-5), "mismatch vs reference"

    # Also exercise the 2-D input path (batch, n_features).
    feat2d = features[:, 0, :]
    out2d = jax.block_until_ready(ff_forward(feat2d, params))
    assert out2d.shape == (batch, hidden_size[-1])
    assert jnp.allclose(out2d, ff_reference(feat2d, params), atol=1e-5, rtol=1e-5)

    # Larger M path to exercise the multi-tile grid with a bigger row tile.
    big = jax.random.normal(k_in, (4, 300, n_features), jnp.float32)
    out_big = jax.block_until_ready(ff_forward(big, params))
    assert out_big.shape == (4, 300, hidden_size[-1])
    assert jnp.allclose(out_big, ff_reference(big, params), atol=1e-5, rtol=1e-5)

    # Default pyannote config (hidden_size=[16]) to mirror the module's defaults.
    params_def = init_ff_params(k_par, n_features, [16])
    out_def = jax.block_until_ready(ff_forward(features, params_def))
    assert out_def.shape == (batch, n_samples, 16)
    assert jnp.allclose(out_def, ff_reference(features, params_def), atol=1e-5, rtol=1e-5)

    print("KERNEL_OK")
</pallas_src>

<mosaic_0001>
module attributes {stable_mosaic.version = 11 : i64} {
  func.func @_ff_fused_kernel(%arg0: i32, %arg1: memref<8x128xf32, #tpu.memory_space<vmem>>, %arg2: memref<128x128xf32, #tpu.memory_space<vmem>>, %arg3: memref<1x128xf32, #tpu.memory_space<vmem>>, %arg4: memref<128x128xf32, #tpu.memory_space<vmem>>, %arg5: memref<1x128xf32, #tpu.memory_space<vmem>>, %arg6: memref<8x128xf32, #tpu.memory_space<vmem>>) attributes {dimension_semantics = [#tpu.dimension_semantics<parallel>], iteration_bounds = array<i64: 2>, scalar_prefetch = 0 : i64, scratch_operands = 0 : i64, tpu.core_type = #tpu.core_type<tc>, window_params = [{transform_indices = @transform_0, window_bounds = array<i64: 8, 128>}, {pipeline_mode = #tpu.pipeline_mode<synchronous>, transform_indices = @transform_1, window_bounds = array<i64: 128, 128>}, {pipeline_mode = #tpu.pipeline_mode<synchronous>, transform_indices = @transform_2, window_bounds = array<i64: 1, 128>}, {pipeline_mode = #tpu.pipeline_mode<synchronous>, transform_indices = @transform_3, window_bounds = array<i64: 128, 128>}, {pipeline_mode = #tpu.pipeline_mode<synchronous>, transform_indices = @transform_4, window_bounds = array<i64: 1, 128>}, {transform_indices = @transform_5, window_bounds = array<i64: 8, 128>}]} {
    %c0 = arith.constant 0 : index
    %c0_0 = arith.constant 0 : index
    %0 = vector.load %arg1[%c0, %c0_0] : memref<8x128xf32, #tpu.memory_space<vmem>>, vector<8x128xf32>
    %c0_1 = arith.constant 0 : index
    %c0_2 = arith.constant 0 : index
    %1 = vector.load %arg2[%c0_1, %c0_2] : memref<128x128xf32, #tpu.memory_space<vmem>>, vector<128x128xf32>
    %cst = arith.constant dense<0.000000e+00> : vector<8x128xf32>
    %2 = tpu.matmul %0, %1, %cst {dimension_numbers = #tpu.dot_dimension_numbers<[1], [0], [0], [1], [0, 0, 1, 1], [], []>} : vector<8x128xf32>, vector<128x128xf32>, vector<8x128xf32> -> vector<8x128xf32>
    %c0_3 = arith.constant 0 : index
    %c0_4 = arith.constant 0 : index
    %3 = vector.load %arg3[%c0_3, %c0_4] : memref<1x128xf32, #tpu.memory_space<vmem>>, vector<1x128xf32>
    %4 = vector.broadcast %3 : vector<1x128xf32> to vector<8x128xf32>
    %5 = arith.addf %2, %4 : vector<8x128xf32>
    %6 = math.tanh %5 : vector<8x128xf32>
    %c0_5 = arith.constant 0 : index
    %c0_6 = arith.constant 0 : index
    %7 = vector.load %arg4[%c0_5, %c0_6] : memref<128x128xf32, #tpu.memory_space<vmem>>, vector<128x128xf32>
    %cst_7 = arith.constant dense<0.000000e+00> : vector<8x128xf32>
    %8 = tpu.matmul %6, %7, %cst_7 {dimension_numbers = #tpu.dot_dimension_numbers<[1], [0], [0], [1], [0, 0, 1, 1], [], []>} : vector<8x128xf32>, vector<128x128xf32>, vector<8x128xf32> -> vector<8x128xf32>
    %c0_8 = arith.constant 0 : index
    %c0_9 = arith.constant 0 : index
    %9 = vector.load %arg5[%c0_8, %c0_9] : memref<1x128xf32, #tpu.memory_space<vmem>>, vector<1x128xf32>
    %10 = vector.broadcast %9 : vector<1x128xf32> to vector<8x128xf32>
    %11 = arith.addf %8, %10 : vector<8x128xf32>
    %12 = math.tanh %11 : vector<8x128xf32>
    %c0_10 = arith.constant 0 : index
    %c0_11 = arith.constant 0 : index
    %13 = vector.load %arg6[%c0_10, %c0_11] : memref<8x128xf32, #tpu.memory_space<vmem>>, vector<8x128xf32>
    tpu.vector_store %arg6[%c0_10, %c0_11], %12 {strides = array<i32>} : memref<8x128xf32, #tpu.memory_space<vmem>>, vector<8x128xf32>,
    return
  }
  func.func @transform_0(%arg0: i32) -> (i32, i32) {
    %c0_i32 = arith.constant 0 : i32
    %c0_i32_0 = arith.constant 0 : i32
    return %arg0, %c0_i32 : i32, i32
  }
  func.func @transform_1(%arg0: i32) -> (i32, i32) {
    %c0_i32 = arith.constant 0 : i32
    %c0_i32_0 = arith.constant 0 : i32
    %c0_i32_1 = arith.constant 0 : i32
    return %c0_i32, %c0_i32_0 : i32, i32
  }
  func.func @transform_2(%arg0: i32) -> (i32, i32) {
    %c0_i32 = arith.constant 0 : i32
    %c0_i32_0 = arith.constant 0 : i32
    %c0_i32_1 = arith.constant 0 : i32
    return %c0_i32, %c0_i32_0 : i32, i32
  }
  func.func @transform_3(%arg0: i32) -> (i32, i32) {
    %c0_i32 = arith.constant 0 : i32
    %c0_i32_0 = arith.constant 0 : i32
    %c0_i32_1 = arith.constant 0 : i32
    return %c0_i32, %c0_i32_0 : i32, i32
  }
  func.func @transform_4(%arg0: i32) -> (i32, i32) {
    %c0_i32 = arith.constant 0 : i32
    %c0_i32_0 = arith.constant 0 : i32
    %c0_i32_1 = arith.constant 0 : i32
    return %c0_i32, %c0_i32_0 : i32, i32
  }
  func.func @transform_5(%arg0: i32) -> (i32, i32) {
    %c0_i32 = arith.constant 0 : i32
    %c0_i32_0 = arith.constant 0 : i32
    return %arg0, %c0_i32 : i32, i32
  }
}

</mosaic_0001>

<llo_original>
// kernel: ff_forward.1
$region0: #{ff_forward.1}
  #allocation0 [shape = 'u32[]', space=smem, size = 0x4, offset = 0x4, fixed_abs, tag = 'smem constant byte address 0x4 - core index']
  #allocation1 [shape = 'u32[144,128]{1,0:T(1,128)}', space=vmem, size = 0x12000, scoped, tag = 'internal scratch']
  %s0 = inlined_call_operand.vmem [shape: f32[16,128], index: 0, kind: input, shape index: {}]
  %s1 = inlined_call_operand.vmem [shape: f32[128,128], index: 1, kind: input, shape index: {}]
  %s2 = inlined_call_operand.vmem [shape: f32[1,128], index: 2, kind: input, shape index: {}]
  %s3 = inlined_call_operand.vmem [shape: f32[128,128], index: 3, kind: input, shape index: {}]
  %s4 = inlined_call_operand.vmem [shape: f32[1,128], index: 4, kind: input, shape index: {}]
  %s5 = inlined_call_operand.vmem [shape: f32[16,128], index: 5, kind: output, shape index: {}]
  %s6 = sld [smem:[#allocation0]]
  $region53: #{ff_forward.1} parent=0
    _
  %s8 = ssub.s32 1, %s6
  %s9 = scalar_select 0, %s8, %s6
  loop: start=0, step=1, limit=4
  $region2: #{ff_forward.1} parent=0 // loop_pre_header
    _
  $region3: #{ff_forward.1} parent=0 // loop_header
    %s11 = sphi 0, %s15
    %p12 = scmp.ge.s32.totalorder %s11, 4
    %s21 = sphi 0, %s23
    %s24 = sphi 0, %s21
    %s25 = sphi 0, %s24
    %s41 = sphi 0, %s25
    %s45 = sphi 0, %s45
    %s47 = sphi 0, %s45
    %s48 = sphi 0, %s47
    %s62 = sphi 0, %s48
    %s66 = sphi 0, %s66
    %s68 = sphi 0, %s66
    %s69 = sphi 0, %s68
    %s83 = sphi 0, %s69
    %s87 = sphi 0, %s87
    %s89 = sphi 0, %s87
    %s90 = sphi 0, %s89
    %s104 = sphi 0, %s90
    %s108 = sphi 0, %s108
    %s110 = sphi 0, %s108
    %s111 = sphi 0, %s110
    %s125 = sphi 0, %s111
    %s131 = sphi 0, %s133
    %s134 = sphi 0, %s131
    %s135 = sphi 0, %s134
    %s151 = sphi 0, %s135
  $region4: #{ff_forward.1} parent=0 // loop_header_branch
    %14 = sbr.rel (%p12) target = $region8
  $region5: #{ff_forward.1} parent=0 // loop_body
    %s16 = ssub.s32 %s11, 1
    %s17 = ssub.s32 %s11, 2
    %s18 = sadd.s32 %s11, 1
    %s19 = ssub.s32 %s11, %s18
    %p20 = scmp.eq.s32.totalorder %s19, 0
    %s22 = sadd.s32 %s21, 1
    %s23 = scalar_select %p20, %s21, %s22
    %p26 = pneg %p20
    %p27 = scmp.eq.s32.totalorder %s11, 1
    %p28 = por %p26, %p27
    %p29 = scmp.ne.s32.totalorder %s21, %s24
    %p30 = scmp.eq.s32.totalorder %s11, 0
    %p31 = por %p29, %p30
    %p32 = scmp.ne.s32.totalorder %s21, %s24
    %p33 = scmp.eq.s32.totalorder %s16, 1
    %p34 = por %p32, %p33
    %p35 = scmp.ne.s32.totalorder %s24, %s25
    %p36 = scmp.eq.s32.totalorder %s16, 0
    %p37 = por %p35, %p36
    %p38 = scmp.ne.s32.totalorder %s24, %s25
    %p39 = scmp.eq.s32.totalorder %s17, 1
    %p40 = por %p38, %p39
    %p42 = scmp.ne.s32.totalorder %s25, %s41
    %p43 = scmp.eq.s32.totalorder %s17, 0
    %p44 = por %p42, %p43
    %s46 = sadd.s32 %s45, 1
    %p49 = scmp.eq.s32.totalorder %s11, 1
    %p50 = scmp.ne.s32.totalorder %s45, %s47
    %p51 = scmp.eq.s32.totalorder %s11, 0
    %p52 = por %p50, %p51
    %p53 = scmp.ne.s32.totalorder %s45, %s47
    %p54 = scmp.eq.s32.totalorder %s16, 1
    %p55 = por %p53, %p54
    %p56 = scmp.ne.s32.totalorder %s47, %s48
    %p57 = scmp.eq.s32.totalorder %s16, 0
    %p58 = por %p56, %p57
    %p59 = scmp.ne.s32.totalorder %s47, %s48
    %p60 = scmp.eq.s32.totalorder %s17, 1
    %p61 = por %p59, %p60
    %p63 = scmp.ne.s32.totalorder %s48, %s62
    %p64 = scmp.eq.s32.totalorder %s17, 0
    %p65 = por %p63, %p64
    %s67 = sadd.s32 %s66, 1
    %p70 = scmp.eq.s32.totalorder %s11, 1
    %p71 = scmp.ne.s32.totalorder %s66, %s68
    %p72 = scmp.eq.s32.totalorder %s11, 0
    %p73 = por %p71, %p72
    %p74 = scmp.ne.s32.totalorder %s66, %s68
    %p75 = scmp.eq.s32.totalorder %s16, 1
    %p76 = por %p74, %p75
    %p77 = scmp.ne.s32.totalorder %s68, %s69
    %p78 = scmp.eq.s32.totalorder %s16, 0
    %p79 = por %p77, %p78
    %p80 = scmp.ne.s32.totalorder %s68, %s69
    %p81 = scmp.eq.s32.totalorder %s17, 1
    %p82 = por %p80, %p81
    %p84 = scmp.ne.s32.totalorder %s69, %s83
    %p85 = scmp.eq.s32.totalorder %s17, 0
    %p86 = por %p84, %p85
    %s88 = sadd.s32 %s87, 1
    %p91 = scmp.eq.s32.totalorder %s11, 1
    %p92 = scmp.ne.s32.totalorder %s87, %s89
    %p93 = scmp.eq.s32.totalorder %s11, 0
    %p94 = por %p92, %p93
    %p95 = scmp.ne.s32.totalorder %s87, %s89
    %p96 = scmp.eq.s32.totalorder %s16, 1
    %p97 = por %p95, %p96
    %p98 = scmp.ne.s32.totalorder %s89, %s90
    %p99 = scmp.eq.s32.totalorder %s16, 0
    %p100 = por %p98, %p99
    %p101 = scmp.ne.s32.totalorder %s89, %s90
    %p102 = scmp.eq.s32.totalorder %s17, 1
    %p103 = por %p101, %p102
    %p105 = scmp.ne.s32.totalorder %s90, %s104
    %p106 = scmp.eq.s32.totalorder %s17, 0
    %p107 = por %p105, %p106
    %s109 = sadd.s32 %s108, 1
    %p112 = scmp.eq.s32.totalorder %s11, 1
    %p113 = scmp.ne.s32.totalorder %s108, %s110
    %p114 = scmp.eq.s32.totalorder %s11, 0
    %p115 = por %p113, %p114
    %p116 = scmp.ne.s32.totalorder %s108, %s110
    %p117 = scmp.eq.s32.totalorder %s16, 1
    %p118 = por %p116, %p117
    %p119 = scmp.ne.s32.totalorder %s110, %s111
    %p120 = scmp.eq.s32.totalorder %s16, 0
    %p121 = por %p119, %p120
    %p122 = scmp.ne.s32.totalorder %s110, %s111
    %p123 = scmp.eq.s32.totalorder %s17, 1
    %p124 = por %p122, %p123
    %p126 = scmp.ne.s32.totalorder %s111, %s125
    %p127 = scmp.eq.s32.totalorder %s17, 0
    %p128 = por %p126, %p127
    %s129 = ssub.s32 %s11, %s18
    %p130 = scmp.eq.s32.totalorder %s129, 0
    %s132 = sadd.s32 %s131, 1
    %s133 = scalar_select %p130, %s131, %s132
    %p136 = pneg %p130
    %p137 = scmp.eq.s32.totalorder %s11, 1
    %p138 = por %p136, %p137
    %p139 = scmp.ne.s32.totalorder %s131, %s134
    %p140 = scmp.eq.s32.totalorder %s11, 0
    %p141 = por %p139, %p140
    %p142 = scmp.ne.s32.totalorder %s131, %s134
    %p143 = scmp.eq.s32.totalorder %s16, 1
    %p144 = por %p142, %p143
    %p145 = scmp.ne.s32.totalorder %s134, %s135
    %p146 = scmp.eq.s32.totalorder %s16, 0
    %p147 = por %p145, %p146
    %p148 = scmp.ne.s32.totalorder %s134, %s135
    %p149 = scmp.eq.s32.totalorder %s17, 1
    %p150 = por %p148, %p149
    %p152 = scmp.ne.s32.totalorder %s135, %s151
    %p153 = scmp.eq.s32.totalorder %s17, 0
    %p154 = por %p152, %p153
    %p155 = scmp.le.s32.totalorder 1, %s11
    %p156 = scmp.lt.s32.totalorder %s11, 3
    %p157 = pnand %p155, %p156
    %p158 = pneg %p157
    // Predicated region
    $region9: #{ff_forward.1} parent=5 // pred_check
      _
    $region10: #{ff_forward.1} parent=5 // pred_check_branch
      %160 = sbr.rel (%p157) target = $region12
    $region11: #{ff_forward.1} parent=5 // pred_region
      %s161 = ssub.s32 %s11, 1
      // Predicated region
      $region13: #{ff_forward.1} parent=11 // pred_check
        %p162 = pneg %p58
      $region14: #{ff_forward.1} parent=11 // pred_check_branch
        %164 = sbr.rel (%p162) target = $region16
      $region15: #{ff_forward.1} parent=11 // pred_region
        _
      $region16: #{ff_forward.1} parent=11 // pred_fallthru
        _
      // Predicated region
      $region17: #{ff_forward.1} parent=11 // pred_check
        %p165 = pneg %p79
      $region18: #{ff_forward.1} parent=11 // pred_check_branch
        %167 = sbr.rel (%p165) target = $region20
      $region19: #{ff_forward.1} parent=11 // pred_region
        _
      $region20: #{ff_forward.1} parent=11 // pred_fallthru
        _
      // Predicated region
      $region21: #{ff_forward.1} parent=11 // pred_check
        %p168 = pneg %p100
      $region22: #{ff_forward.1} parent=11 // pred_check_branch
        %170 = sbr.rel (%p168) target = $region24
      $region23: #{ff_forward.1} parent=11 // pred_region
        _
      $region24: #{ff_forward.1} parent=11 // pred_fallthru
        _
      // Predicated region
      $region25: #{ff_forward.1} parent=11 // pred_check
        %p171 = pneg %p121
      $region26: #{ff_forward.1} parent=11 // pred_check_branch
        %173 = sbr.rel (%p171) target = $region28
      $region27: #{ff_forward.1} parent=11 // pred_region
        _
      $region28: #{ff_forward.1} parent=11 // pred_fallthru
        _
    $region12: #{ff_forward.1} parent=5 // pred_fallthru
      _
    %p174 = scmp.lt.s32.totalorder %s11, 2
    // Predicated region
    $region29: #{ff_forward.1} parent=5 // pred_check
      %p175 = pneg %p174
    $region30: #{ff_forward.1} parent=5 // pred_check_branch
      %177 = sbr.rel (%p175) target = $region32
    $region31: #{ff_forward.1} parent=5 // pred_region
      // Predicated region
      $region33: #{ff_forward.1} parent=31 // pred_check
        %p178 = pneg %p31
      $region34: #{ff_forward.1} parent=31 // pred_check_branch
        %180 = sbr.rel (%p178) target = $region36
      $region35: #{ff_forward.1} parent=31 // pred_region
        %p181 = scmp.lt.s32.totalorder %s11, 1
        %s182 = scalar_select %p181, %s11, 1
        %s183 = smul.addr %s182, 8
        %s184 = scalar_lea.vmem %s0, %s183
      $region36: #{ff_forward.1} parent=31 // pred_fallthru
        _
    $region32: #{ff_forward.1} parent=5 // pred_fallthru
      _
    %p185 = scmp.le.s32.totalorder 1, %s11
    %p186 = scmp.lt.s32.totalorder %s11, 3
    %p187 = pnand %p185, %p186
    %p188 = pneg %p187
    // Predicated region
    $region37: #{ff_forward.1} parent=5 // pred_check
      _
    $region38: #{ff_forward.1} parent=5 // pred_check_branch
      %190 = sbr.rel (%p187) target = $region40
    $region39: #{ff_forward.1} parent=5 // pred_region
      %s191 = ssub.s32 %s11, 1
      %p192 = scmp.lt.s32.totalorder %s16, 1
      %s193 = scalar_select %p192, %s16, 1
      %s194 = smul.addr %s193, 8
      %s195 = scalar_lea.vmem %s0, %s194
      %p196 = pneg %p37
      %p197 = pneg %p34
      %p198 = pneg %p58
      %p199 = pneg %p55
      %p200 = pneg %p79
      %p201 = pneg %p76
      %p202 = pneg %p100
      %p203 = pneg %p97
      %p204 = pneg %p121
      %p205 = pneg %p118
      %p206 = pneg %p147
      %p207 = pneg %p144
      %p208 = scmp.lt.s32.totalorder %s16, 1
      %s209 = scalar_select %p208, %s16, 1
      %s210 = smul.addr %s209, 8
      %s211 = scalar_lea.vmem %s5, %s210
      %p212 = scmp.lt.s32.totalorder %s16, 1
      %s213 = scalar_select %p212, %s16, 1
      %s214 = smul.addr %s213, 8
      %s215 = scalar_lea.vmem %s0, %s214
      %p216 = scmp.lt.s32.totalorder %s16, 1
      %s217 = scalar_select %p216, %s16, 1
      %s218 = smul.addr %s217, 8
      %s219 = scalar_lea.vmem %s5, %s218
      %v220 = vld [vmem:[%s215] sm:$0xff]
      %v221 = vld [vmem:[%s1] sm:$0xff]
      %v222 = vld [vmem:[%s1 + $0x8] sm:$0xff]
      %v223 = vld [vmem:[%s1 + $0x10] sm:$0xff]
      %v224 = vld [vmem:[%s1 + $0x18] sm:$0xff]
      %v225 = vld [vmem:[%s1 + $0x20] sm:$0xff]
      %v226 = vld [vmem:[%s1 + $0x28] sm:$0xff]
      %v227 = vld [vmem:[%s1 + $0x30] sm:$0xff]
      %v228 = vld [vmem:[%s1 + $0x38] sm:$0xff]
      %v229 = vld [vmem:[%s1 + $0x40] sm:$0xff]
      %v230 = vld [vmem:[%s1 + $0x48] sm:$0xff]
      %v231 = vld [vmem:[%s1 + $0x50] sm:$0xff]
      %v232 = vld [vmem:[%s1 + $0x58] sm:$0xff]
      %v233 = vld [vmem:[%s1 + $0x60] sm:$0xff]
      %v234 = vld [vmem:[%s1 + $0x68] sm:$0xff]
      %v235 = vld [vmem:[%s1 + $0x70] sm:$0xff]
      %v236 = vld [vmem:[%s1 + $0x78] sm:$0xff]
      %v237 = vld [vmem:[%s2] sm:$0x1]
      %v239 = vlaneseq
      %v240 = vshrl.u32 %v239, 7
      %v241 = vsub.s32 0, %v240
      %v242 = vrot.slane %v237, %v241
      %244 = vmatprep.subr.mxu0 0.0
      %245 = vmatpush1.msra.mxu0 %v236
      %246 = vmatprep.subr.mxu0 0.0
      %247 = vmatpush1.msra.mxu0 %v235
      %248 = vmatprep.subr.mxu0 0.0
      %249 = vmatpush1.msra.mxu0 %v234
      %250 = vmatprep.subr.mxu0 0.0
      %251 = vmatpush1.msra.mxu0 %v233
      %252 = vmatprep.subr.mxu0 0.0
      %253 = vmatpush1.msra.mxu0 %v232
      %254 = vmatprep.subr.mxu0 0.0
      %255 = vmatpush1.msra.mxu0 %v231
      %256 = vmatprep.subr.mxu0 0.0
      %257 = vmatpush1.msra.mxu0 %v230
      %258 = vmatprep.subr.mxu0 0.0
      %259 = vmatpush1.msra.mxu0 %v229
      %260 = vmatprep.subr.mxu0 0.0
      %261 = vmatpush1.msra.mxu0 %v228
      %262 = vmatprep.subr.mxu0 0.0
      %263 = vmatpush1.msra.mxu0 %v227
      %264 = vmatprep.subr.mxu0 0.0
      %265 = vmatpush1.msra.mxu0 %v226
      %266 = vmatprep.subr.mxu0 0.0
      %267 = vmatpush1.msra.mxu0 %v225
      %268 = vmatprep.subr.mxu0 0.0
      %269 = vmatpush1.msra.mxu0 %v224
      %270 = vmatprep.subr.mxu0 0.0
      %271 = vmatpush1.msra.mxu0 %v223
      %272 = vmatprep.subr.mxu0 0.0
      %273 = vmatpush1.msra.mxu0 %v222
      %274 = vmatprep.subr.mxu0 0.0
      %275 = vmatpush1.msra.mxu0 %v221
      %276 = vmatprep.subr.mxu0 0.0
      %277 = vmatpush2.msra.mxu0 0.0
      %278 = vmatprep.subr.mxu0 0.0
      %279 = vmatpush2.msra.mxu0 0.0
      %280 = vmatprep.subr.mxu0 0.0
      %281 = vmatpush2.msra.mxu0 0.0
      %282 = vmatprep.subr.mxu0 0.0
      %283 = vmatpush2.msra.mxu0 0.0
      %284 = vmatprep.subr.mxu0 0.0
      %285 = vmatpush2.msra.mxu0 0.0
      %286 = vmatprep.subr.mxu0 0.0
      %287 = vmatpush2.msra.mxu0 0.0
      %288 = vmatprep.subr.mxu0 0.0
      %289 = vmatpush2.msra.mxu0 0.0
      %290 = vmatprep.subr.mxu0 0.0
      %291 = vmatpush2.msra.mxu0 0.0
      %292 = vmatprep.subr.mxu0 0.0
      %293 = vmatpush2.msra.mxu0 0.0
      %294 = vmatprep.subr.mxu0 0.0
      %295 = vmatpush2.msra.mxu0 0.0
      %296 = vmatprep.subr.mxu0 0.0
      %297 = vmatpush2.msra.mxu0 0.0
      %298 = vmatprep.subr.mxu0 0.0
      %299 = vmatpush2.msra.mxu0 0.0
      %300 = vmatprep.subr.mxu0 0.0
      %301 = vmatpush2.msra.mxu0 0.0
      %302 = vmatprep.subr.mxu0 0.0
      %303 = vmatpush2.msra.mxu0 0.0
      %304 = vmatprep.subr.mxu0 0.0
      %305 = vmatpush2.msra.mxu0 0.0
      %306 = vmatprep.subr.mxu0 0.0
      %307 = vmatpush2.msra.mxu0 0.0
      %308 = vmatprep.mubr.f32.mxu0 0.0
      %309 = vmatmul.mubr.f32.gmra.mxu0 %v220
      %v310 = vpop.f32.mrf.mxu0
      %v311 = vadd.f32 %v242, %v310
      %v312 = vpop.f32.mrf.mxu0
      %313 = vdwg.mxu0
      %v314 = vtanh.pop %v311
      %v315 = vld [vmem:[%s3] sm:$0xff]
      %v316 = vld [vmem:[%s3 + $0x8] sm:$0xff]
      %v317 = vld [vmem:[%s3 + $0x10] sm:$0xff]
      %v318 = vld [vmem:[%s3 + $0x18] sm:$0xff]
      %v319 = vld [vmem:[%s3 + $0x20] sm:$0xff]
      %v320 = vld [vmem:[%s3 + $0x28] sm:$0xff]
      %v321 = vld [vmem:[%s3 + $0x30] sm:$0xff]
      %v322 = vld [vmem:[%s3 + $0x38] sm:$0xff]
      %v323 = vld [vmem:[%s3 + $0x40] sm:$0xff]
      %v324 = vld [vmem:[%s3 + $0x48] sm:$0xff]
      %v325 = vld [vmem:[%s3 + $0x50] sm:$0xff]
      %v326 = vld [vmem:[%s3 + $0x58] sm:$0xff]
      %v327 = vld [vmem:[%s3 + $0x60] sm:$0xff]
      %v328 = vld [vmem:[%s3 + $0x68] sm:$0xff]
      %v329 = vld [vmem:[%s3 + $0x70] sm:$0xff]
      %v330 = vld [vmem:[%s3 + $0x78] sm:$0xff]
      %v331 = vld [vmem:[%s4] sm:$0x1]
      %v333 = vlaneseq
      %v334 = vshrl.u32 %v333, 7
      %v335 = vsub.s32 0, %v334
      %v336 = vrot.slane %v331, %v335
      %338 = vmatprep.subr.mxu0 0.0
      %339 = vmatpush1.msra.mxu0 %v330
      %340 = vmatprep.subr.mxu0 0.0
      %341 = vmatpush1.msra.mxu0 %v329
      %342 = vmatprep.subr.mxu0 0.0
      %343 = vmatpush1.msra.mxu0 %v328
      %344 = vmatprep.subr.mxu0 0.0
      %345 = vmatpush1.msra.mxu0 %v327
      %346 = vmatprep.subr.mxu0 0.0
      %347 = vmatpush1.msra.mxu0 %v326
      %348 = vmatprep.subr.mxu0 0.0
      %349 = vmatpush1.msra.mxu0 %v325
      %350 = vmatprep.subr.mxu0 0.0
      %351 = vmatpush1.msra.mxu0 %v324
      %352 = vmatprep.subr.mxu0 0.0
      %353 = vmatpush1.msra.mxu0 %v323
      %354 = vmatprep.subr.mxu0 0.0
      %355 = vmatpush1.msra.mxu0 %v322
      %356 = vmatprep.subr.mxu0 0.0
      %357 = vmatpush1.msra.mxu0 %v321
      %358 = vmatprep.subr.mxu0 0.0
      %359 = vmatpush1.msra.mxu0 %v320
      %360 = vmatprep.subr.mxu0 0.0
      %361 = vmatpush1.msra.mxu0 %v319
      %362 = vmatprep.subr.mxu0 0.0
      %363 = vmatpush1.msra.mxu0 %v318
      %364 = vmatprep.subr.mxu0 0.0
      %365 = vmatpush1.msra.mxu0 %v317
      %366 = vmatprep.subr.mxu0 0.0
      %367 = vmatpush1.msra.mxu0 %v316
      %368 = vmatprep.subr.mxu0 0.0
      %369 = vmatpush1.msra.mxu0 %v315
      %370 = vmatprep.subr.mxu0 0.0
      %371 = vmatpush2.msra.mxu0 0.0
      %372 = vmatprep.subr.mxu0 0.0
      %373 = vmatpush2.msra.mxu0 0.0
      %374 = vmatprep.subr.mxu0 0.0
      %375 = vmatpush2.msra.mxu0 0.0
      %376 = vmatprep.subr.mxu0 0.0
      %377 = vmatpush2.msra.mxu0 0.0
      %378 = vmatprep.subr.mxu0 0.0
      %379 = vmatpush2.msra.mxu0 0.0
      %380 = vmatprep.subr.mxu0 0.0
      %381 = vmatpush2.msra.mxu0 0.0
      %382 = vmatprep.subr.mxu0 0.0
      %383 = vmatpush2.msra.mxu0 0.0
      %384 = vmatprep.subr.mxu0 0.0
      %385 = vmatpush2.msra.mxu0 0.0
      %386 = vmatprep.subr.mxu0 0.0
      %387 = vmatpush2.msra.mxu0 0.0
      %388 = vmatprep.subr.mxu0 0.0
      %389 = vmatpush2.msra.mxu0 0.0
      %390 = vmatprep.subr.mxu0 0.0
      %391 = vmatpush2.msra.mxu0 0.0
      %392 = vmatprep.subr.mxu0 0.0
      %393 = vmatpush2.msra.mxu0 0.0
      %394 = vmatprep.subr.mxu0 0.0
      %395 = vmatpush2.msra.mxu0 0.0
      %396 = vmatprep.subr.mxu0 0.0
      %397 = vmatpush2.msra.mxu0 0.0
      %398 = vmatprep.subr.mxu0 0.0
      %399 = vmatpush2.msra.mxu0 0.0
      %400 = vmatprep.subr.mxu0 0.0
      %401 = vmatpush2.msra.mxu0 0.0
      %402 = vmatprep.mubr.f32.mxu0 0.0
      %403 = vmatmul.mubr.f32.gmra.mxu0 %v314
      %v404 = vpop.f32.mrf.mxu0
      %v405 = vadd.f32 %v336, %v404
      %v406 = vpop.f32.mrf.mxu0
      %407 = vdwg.mxu0
      %v408 = vtanh.pop %v405
      %409 = vst [vmem:[%s219] sm:$0xff] %v408
      %p410 = scmp.lt.s32.totalorder %s16, 1
      %s411 = scalar_select %p410, %s16, 1
      %s412 = smul.addr %s411, 8
      %s413 = scalar_lea.vmem %s5, %s412
      // Predicated region
      $region41: #{ff_forward.1} parent=39 // pred_check
        %p414 = pneg %p144
      $region42: #{ff_forward.1} parent=39 // pred_check_branch
        %416 = sbr.rel (%p414) target = $region44
      $region43: #{ff_forward.1} parent=39 // pred_region
        _
      $region44: #{ff_forward.1} parent=39 // pred_fallthru
        _
    $region40: #{ff_forward.1} parent=5 // pred_fallthru
      _
    %p417 = scmp.le.s32.totalorder 2, %s11
    // Predicated region
    $region45: #{ff_forward.1} parent=5 // pred_check
      %p418 = pneg %p417
    $region46: #{ff_forward.1} parent=5 // pred_check_branch
      %420 = sbr.rel (%p418) target = $region48
    $region47: #{ff_forward.1} parent=5 // pred_region
      %s421 = ssub.s32 %s11, 2
      // Predicated region
      $region49: #{ff_forward.1} parent=47 // pred_check
        %p422 = pneg %p150
      $region50: #{ff_forward.1} parent=47 // pred_check_branch
        %424 = sbr.rel (%p422) target = $region52
      $region51: #{ff_forward.1} parent=47 // pred_region
        %p425 = scmp.lt.s32.totalorder %s17, 1
        %s426 = scalar_select %p425, %s17, 1
        %s427 = smul.addr %s426, 8
        %s428 = scalar_lea.vmem %s5, %s427
      $region52: #{ff_forward.1} parent=47 // pred_fallthru
        _
    $region48: #{ff_forward.1} parent=5 // pred_fallthru
      _
  $region6: #{ff_forward.1} parent=0 // loop_footer
    %s15 = sadd.s32 1, %s11
  $region7: #{ff_forward.1} parent=0 // loop_footer_branch
    %10 = sbr.rel target = $region3
  $region8: #{ff_forward.1} parent=0 // loop_exit
    _

</llo_original>
